<compile_context>
chip_gen: v7x
topology: tpu7x:2x2x1
jax: 0.10.0
libtpu: 0.0.40
codegen_flags: <defaults>
</compile_context>

<pallas_src>
import functools

import jax
import jax.numpy as jnp
from jax.experimental import pallas as pl
from jax.experimental.pallas import tpu as pltpu


def conv3d_relu_kernel(x_ref, w_ref, b_ref, o_ref):
    # x_ref : (1, Kp, bm)    bf16 -- all 27 (kd,kh,kw) taps folded into channels
    # w_ref : (Cout, Kp)     bf16
    # b_ref : (Cout, 1)      f32
    # o_ref : (1, Cout, bm)  f32  -- Cout on sublanes, bm lane-dense
    acc = jnp.dot(w_ref[...], x_ref[0], preferred_element_type=jnp.float32)
    o_ref[0] = jnp.maximum(acc + b_ref[...], 0.0).astype(o_ref.dtype)


def conv_block_forward(x_ncdhw, weight_oidhw, bias, *, block_d=None):
    """relu(conv3d(x, weight, bias, padding='same')); PyTorch NCDHW in/out."""
    N, Cin, D, H, W = x_ncdhw.shape
    Cout = weight_oidhw.shape[0]
    HW = H * W
    K27 = 27 * Cin
    Kp = ((K27 + 7) // 8) * 8                 # sublane-clean contraction width

    # ---- generation-aware VMEM budget (64 MiB v7x vs 128 MiB v5e/v6e) ----
    try:
        vmem_cap = int(pltpu.get_tpu_info().vmem_capacity_bytes)
    except Exception:
        vmem_cap = 64 * 1024 * 1024           # conservative (v7x) fallback
    vmem_limit = int(vmem_cap * 0.78)         # ~50 MiB v7x, ~100 MiB v5e/v6e
    block_budget = vmem_limit // 2            # headroom for pipeline/compiler

    per_d_bytes = HW * (Kp * 2 + Cout * 4)    # bf16 input + f32 output per depth

    def _lane_ok(c):                          # lane-dense (or full-extent) block
        return (c * HW) % 128 == 0 or c == D

    if block_d is None:
        divisors = [c for c in range(D, 0, -1) if D % c == 0 and _lane_ok(c)]
        block_d = divisors[-1]                # smallest valid as fallback
        for c in divisors:                    # biggest tile that fits the budget
            if 2 * c * per_d_bytes <= block_budget:
                block_d = c
                break
    assert D % block_d == 0 and _lane_ok(block_d)
    nd = D // block_d
    bm = block_d * HW

    # ---- wrapper-side im2col fold (cast to bf16 BEFORE pad/concat) -------
    x_bf = x_ncdhw.astype(jnp.bfloat16)
    x_pad = jnp.pad(x_bf, ((0, 0), (0, 0), (1, 1), (1, 1), (1, 1)))
    slabs = [x_pad[:, :, kd:kd + D, kh:kh + H, kw:kw + W]
             for kd in range(3) for kh in range(3) for kw in range(3)]
    if Kp > K27:
        slabs.append(jnp.zeros((N, Kp - K27, D, H, W), jnp.bfloat16))
    xf = jnp.concatenate(slabs, axis=1).reshape(N, Kp, D * HW)
    # TODO(synk): for large Cin, replace the 27-tap fold with a 9*Cin fold plus
    # manual halo-overlapped double-buffered DMA along D (memory_space=pl.ANY)
    # to avoid the 3x input-byte cost of folding kd.

    # Weights -> (Cout, kd, kh, kw, Cin) -> (Cout, K27), pad K, bf16.
    w = jnp.transpose(weight_oidhw, (0, 2, 3, 4, 1)).reshape(Cout, K27)
    w = jnp.pad(w, ((0, 0), (0, Kp - K27))).astype(jnp.bfloat16)
    b = bias.astype(jnp.float32).reshape(Cout, 1)

    out_dtype = x_ncdhw.dtype
    cost = pl.CostEstimate(
        flops=2 * N * D * HW * Kp * Cout,
        transcendentals=0,
        bytes_accessed=(xf.size * 2 + w.size * 2 + b.size * 4
                        + N * Cout * D * HW * jnp.dtype(out_dtype).itemsize))

    out = pl.pallas_call(
        conv3d_relu_kernel,
        out_shape=jax.ShapeDtypeStruct((N, Cout, D * HW), out_dtype),
        grid=(N, nd),
        in_specs=[
            pl.BlockSpec((1, Kp, bm), lambda n, d: (n, 0, d)),
            pl.BlockSpec((Cout, Kp), lambda n, d: (0, 0)),
            pl.BlockSpec((Cout, 1), lambda n, d: (0, 0)),
        ],
        out_specs=pl.BlockSpec((1, Cout, bm), lambda n, d: (n, 0, d)),
        # Non-overlapping, independent blocks on both axes -> both parallel.
        compiler_params=pltpu.CompilerParams(
            dimension_semantics=("parallel", "parallel"),
            vmem_limit_bytes=vmem_limit),
        cost_estimate=cost,
    )(xf, w, b)

    # (N, Cout, D*HW) is already channel-major: plain reshape, no transpose.
    return out.reshape(N, Cout, D, H, W)


if __name__ == "__main__":
    key = jax.random.PRNGKey(0)
    k_x, k_w, k_b = jax.random.split(key, 3)

    N, Cin, Cout = 2, 4, 8
    D = H = W = 8

    # Deterministic synthetic parameters (PyTorch-like uniform init scale).
    fan_in = Cin * 3 * 3 * 3
    bound = 1.0 / (fan_in ** 0.5)
    x = jax.random.normal(k_x, (N, Cin, D, H, W), dtype=jnp.float32)
    weight = jax.random.uniform(k_w, (Cout, Cin, 3, 3, 3),
                                minval=-bound, maxval=bound,
                                dtype=jnp.float32)
    bias = jax.random.uniform(k_b, (Cout,), minval=-bound, maxval=bound,
                              dtype=jnp.float32)

    fwd = jax.jit(functools.partial(conv_block_forward, block_d=4))  # exercise D tiling
    out = jax.block_until_ready(fwd(x, weight, bias))

    # Reference: plain-JAX conv with nn.Conv3d 'same' semantics.
    ref = jax.lax.conv_general_dilated(
        x, weight, window_strides=(1, 1, 1), padding='SAME',
        dimension_numbers=('NCDHW', 'OIDHW', 'NCDHW'))
    ref = jnp.maximum(ref + bias.reshape(1, Cout, 1, 1, 1), 0.0)

    assert out.shape == (N, Cout, D, H, W)
    # bf16 inputs / f32 accumulation -> loosened tolerance vs f32 reference.
    assert jnp.allclose(out, ref, atol=3e-2, rtol=3e-2), \
        float(jnp.max(jnp.abs(out - ref)))
    print("KERNEL_OK")
</pallas_src>

<mosaic_0001>
module attributes {stable_mosaic.version = 11 : i64} {
  func.func @conv3d_relu_kernel(%arg0: i32, %arg1: i32, %arg2: memref<1x112x256xbf16, #tpu.memory_space<vmem>>, %arg3: memref<8x112xbf16, #tpu.memory_space<vmem>>, %arg4: memref<8x1xf32, #tpu.memory_space<vmem>>, %arg5: memref<1x8x256xf32, #tpu.memory_space<vmem>>) attributes {dimension_semantics = [#tpu.dimension_semantics<parallel>, #tpu.dimension_semantics<parallel>], iteration_bounds = array<i64: 2, 2>, scalar_prefetch = 0 : i64, scratch_operands = 0 : i64, tpu.core_type = #tpu.core_type<tc>, window_params = [{transform_indices = @transform_0, window_bounds = array<i64: 1, 112, 256>}, {pipeline_mode = #tpu.pipeline_mode<synchronous>, transform_indices = @transform_1, window_bounds = array<i64: 8, 112>}, {pipeline_mode = #tpu.pipeline_mode<synchronous>, transform_indices = @transform_2, window_bounds = array<i64: 8, 1>}, {transform_indices = @transform_3, window_bounds = array<i64: 1, 8, 256>}]} {
    %c0 = arith.constant 0 : index
    %c0_0 = arith.constant 0 : index
    %0 = vector.load %arg3[%c0, %c0_0] : memref<8x112xbf16, #tpu.memory_space<vmem>>, vector<8x112xbf16>
    %c0_1 = arith.constant 0 : index
    %c0_2 = arith.constant 0 : index
    %c0_3 = arith.constant 0 : index
    %1 = vector.load %arg2[%c0_1, %c0_2, %c0_3] : memref<1x112x256xbf16, #tpu.memory_space<vmem>>, vector<1x112x256xbf16>
    %2 = vector.shape_cast %1 : vector<1x112x256xbf16> to vector<112x256xbf16>
    %cst = arith.constant dense<0.000000e+00> : vector<8x256xf32>
    %3 = tpu.matmul %0, %2, %cst {dimension_numbers = #tpu.dot_dimension_numbers<[1], [0], [0], [1], [0, 0, 1, 1], [], []>} : vector<8x112xbf16>, vector<112x256xbf16>, vector<8x256xf32> -> vector<8x256xf32>
    %c0_4 = arith.constant 0 : index
    %c0_5 = arith.constant 0 : index
    %4 = vector.load %arg4[%c0_4, %c0_5] : memref<8x1xf32, #tpu.memory_space<vmem>>, vector<8x1xf32>
    %5 = vector.broadcast %4 : vector<8x1xf32> to vector<8x256xf32>
    %6 = arith.addf %3, %5 : vector<8x256xf32>
    %cst_6 = arith.constant 0.000000e+00 : f32
    %7 = vector.broadcast %cst_6 : f32 to vector<8x256xf32>
    %8 = arith.maximumf %6, %7 : vector<8x256xf32>
    %c0_7 = arith.constant 0 : index
    %c0_8 = arith.constant 0 : index
    %c0_9 = arith.constant 0 : index
    %9 = vector.load %arg5[%c0_7, %c0_8, %c0_9] : memref<1x8x256xf32, #tpu.memory_space<vmem>>, vector<1x8x256xf32>
    %10 = vector.shape_cast %9 : vector<1x8x256xf32> to vector<8x256xf32>
    %11 = vector.shape_cast %8 : vector<8x256xf32> to vector<1x8x256xf32>
    tpu.vector_store %arg5[%c0_7, %c0_8, %c0_9], %11 {strides = array<i32>} : memref<1x8x256xf32, #tpu.memory_space<vmem>>, vector<1x8x256xf32>,
    return
  }
  func.func @transform_0(%arg0: i32, %arg1: i32) -> (i32, i32, i32) {
    %c0_i32 = arith.constant 0 : i32
    %c0_i32_0 = arith.constant 0 : i32
    return %arg0, %c0_i32, %arg1 : i32, i32, i32
  }
  func.func @transform_1(%arg0: i32, %arg1: i32) -> (i32, i32) {
    %c0_i32 = arith.constant 0 : i32
    %c0_i32_0 = arith.constant 0 : i32
    %c0_i32_1 = arith.constant 0 : i32
    return %c0_i32, %c0_i32_0 : i32, i32
  }
  func.func @transform_2(%arg0: i32, %arg1: i32) -> (i32, i32) {
    %c0_i32 = arith.constant 0 : i32
    %c0_i32_0 = arith.constant 0 : i32
    %c0_i32_1 = arith.constant 0 : i32
    return %c0_i32, %c0_i32_0 : i32, i32
  }
  func.func @transform_3(%arg0: i32, %arg1: i32) -> (i32, i32, i32) {
    %c0_i32 = arith.constant 0 : i32
    %c0_i32_0 = arith.constant 0 : i32
    return %arg0, %c0_i32, %arg1 : i32, i32, i32
  }
}

</mosaic_0001>

<llo_original>
// kernel: conv_block_forward.1
$region0: #{conv_block_forward.1}
  #allocation0 [shape = 'u32[]', space=smem, size = 0x4, offset = 0x4, fixed_abs, tag = 'smem constant byte address 0x4 - core index']
  #allocation1 [shape = 'u32[144,128]{1,0:T(1,128)}', space=vmem, size = 0x12000, scoped, tag = 'internal scratch']
  %s0 = inlined_call_operand.vmem [shape: bf16[2,112,512], index: 0, kind: input, shape index: {}]
  %s1 = inlined_call_operand.vmem [shape: bf16[8,112], index: 1, kind: input, shape index: {}]
  %s2 = inlined_call_operand.vmem [shape: f32[8,1], index: 2, kind: input, shape index: {}]
  %s3 = inlined_call_operand.vmem [shape: f32[2,8,512], index: 3, kind: output, shape index: {}]
  %s4 = sld [smem:[#allocation0]]
  $region83: #{conv_block_forward.1} parent=0
    _
  %s6 = ssub.s32 1, %s4
  %s7 = scalar_select 0, %s6, %s4
  $region1: #{conv_block_forward.1} parent=0
    #allocation2 [shape = 'u8[114688]{0}', space=vmem, size = 0x1c000, scoped, tag = 'input window, operand 0']
    loop: start=0, step=1, limit=6
    $region2: #{conv_block_forward.1} parent=1 // loop_pre_header
      _
    $region3: #{conv_block_forward.1} parent=1 // loop_header
      %s9 = sphi 0, %s13
      %p10 = scmp.ge.s32.totalorder %s9, 6
      %s16 = sphi 0, %s28
      %s17 = sphi 0, %s24
      %s18 = sphi 0, %s16
      %s19 = sphi 0, %s17
      %s20 = sphi 0, %s18
      %s21 = sphi 0, %s19
      %s33 = sphi 0, %s35
      %s36 = sphi 0, %s33
      %s37 = sphi 0, %s36
      %s53 = sphi 0, %s37
      %s57 = sphi 0, %s57
      %s59 = sphi 0, %s57
      %s60 = sphi 0, %s59
      %s74 = sphi 0, %s60
      %s78 = sphi 0, %s78
      %s80 = sphi 0, %s78
      %s81 = sphi 0, %s80
      %s95 = sphi 0, %s81
      %s103 = sphi 0, %s105
      %s106 = sphi 0, %s103
      %s107 = sphi 0, %s106
      %s123 = sphi 0, %s107
    $region4: #{conv_block_forward.1} parent=1 // loop_header_branch
      %12 = sbr.rel (%p10) target = $region8
    $region5: #{conv_block_forward.1} parent=1 // loop_body
      %s14 = ssub.s32 %s9, 1
      %s15 = ssub.s32 %s9, 2
      %s22 = sadd.s32 1, %s17
      %p23 = scmp.ge.s32.totalorder %s22, 2
      %s24 = scalar_select %p23, 0, %s22
      %s25 = sadd.s32 1, %s16
      %s26 = scalar_select %p23, %s25, %s16
      %p27 = scmp.ge.s32.totalorder %s26, 2
      %s28 = scalar_select %p27, 0, %s26
      %s29 = ssub.s32 %s16, %s28
      %s30 = ssub.s32 %s17, %s24
      %s31 = sor.u32 %s29, %s30
      %p32 = scmp.eq.s32.totalorder %s31, 0
      %s34 = sadd.s32 %s33, 1
      %s35 = scalar_select %p32, %s33, %s34
      %p38 = pneg %p32
      %p39 = scmp.eq.s32.totalorder %s9, 3
      %p40 = por %p38, %p39
      %p41 = scmp.ne.s32.totalorder %s33, %s36
      %p42 = scmp.eq.s32.totalorder %s9, 0
      %p43 = por %p41, %p42
      %p44 = scmp.ne.s32.totalorder %s33, %s36
      %p45 = scmp.eq.s32.totalorder %s14, 3
      %p46 = por %p44, %p45
      %p47 = scmp.ne.s32.totalorder %s36, %s37
      %p48 = scmp.eq.s32.totalorder %s14, 0
      %p49 = por %p47, %p48
      %p50 = scmp.ne.s32.totalorder %s36, %s37
      %p51 = scmp.eq.s32.totalorder %s15, 3
      %p52 = por %p50, %p51
      %p54 = scmp.ne.s32.totalorder %s37, %s53
      %p55 = scmp.eq.s32.totalorder %s15, 0
      %p56 = por %p54, %p55
      %s58 = sadd.s32 %s57, 1
      %p61 = scmp.eq.s32.totalorder %s9, 3
      %p62 = scmp.ne.s32.totalorder %s57, %s59
      %p63 = scmp.eq.s32.totalorder %s9, 0
      %p64 = por %p62, %p63
      %p65 = scmp.ne.s32.totalorder %s57, %s59
      %p66 = scmp.eq.s32.totalorder %s14, 3
      %p67 = por %p65, %p66
      %p68 = scmp.ne.s32.totalorder %s59, %s60
      %p69 = scmp.eq.s32.totalorder %s14, 0
      %p70 = por %p68, %p69
      %p71 = scmp.ne.s32.totalorder %s59, %s60
      %p72 = scmp.eq.s32.totalorder %s15, 3
      %p73 = por %p71, %p72
      %p75 = scmp.ne.s32.totalorder %s60, %s74
      %p76 = scmp.eq.s32.totalorder %s15, 0
      %p77 = por %p75, %p76
      %s79 = sadd.s32 %s78, 1
      %p82 = scmp.eq.s32.totalorder %s9, 3
      %p83 = scmp.ne.s32.totalorder %s78, %s80
      %p84 = scmp.eq.s32.totalorder %s9, 0
      %p85 = por %p83, %p84
      %p86 = scmp.ne.s32.totalorder %s78, %s80
      %p87 = scmp.eq.s32.totalorder %s14, 3
      %p88 = por %p86, %p87
      %p89 = scmp.ne.s32.totalorder %s80, %s81
      %p90 = scmp.eq.s32.totalorder %s14, 0
      %p91 = por %p89, %p90
      %p92 = scmp.ne.s32.totalorder %s80, %s81
      %p93 = scmp.eq.s32.totalorder %s15, 3
      %p94 = por %p92, %p93
      %p96 = scmp.ne.s32.totalorder %s81, %s95
      %p97 = scmp.eq.s32.totalorder %s15, 0
      %p98 = por %p96, %p97
      %s99 = ssub.s32 %s16, %s28
      %s100 = ssub.s32 %s17, %s24
      %s101 = sor.u32 %s99, %s100
      %p102 = scmp.eq.s32.totalorder %s101, 0
      %s104 = sadd.s32 %s103, 1
      %s105 = scalar_select %p102, %s103, %s104
      %p108 = pneg %p102
      %p109 = scmp.eq.s32.totalorder %s9, 3
      %p110 = por %p108, %p109
      %p111 = scmp.ne.s32.totalorder %s103, %s106
      %p112 = scmp.eq.s32.totalorder %s9, 0
      %p113 = por %p111, %p112
      %p114 = scmp.ne.s32.totalorder %s103, %s106
      %p115 = scmp.eq.s32.totalorder %s14, 3
      %p116 = por %p114, %p115
      %p117 = scmp.ne.s32.totalorder %s106, %s107
      %p118 = scmp.eq.s32.totalorder %s14, 0
      %p119 = por %p117, %p118
      %p120 = scmp.ne.s32.totalorder %s106, %s107
      %p121 = scmp.eq.s32.totalorder %s15, 3
      %p122 = por %p120, %p121
      %p124 = scmp.ne.s32.totalorder %s107, %s123
      %p125 = scmp.eq.s32.totalorder %s15, 0
      %p126 = por %p124, %p125
      %p127 = scmp.le.s32.totalorder 1, %s9
      %p128 = scmp.lt.s32.totalorder %s9, 5
      %p129 = pnand %p127, %p128
      %p130 = pneg %p129
      // Predicated region
      $region9: #{conv_block_forward.1} parent=5 // pred_check
        _
      $region10: #{conv_block_forward.1} parent=5 // pred_check_branch
        %132 = sbr.rel (%p129) target = $region12
      $region11: #{conv_block_forward.1} parent=5 // pred_region
        %s133 = ssub.s32 %s9, 1
        // Predicated region
        $region13: #{conv_block_forward.1} parent=11 // pred_check
          %p134 = pneg %p70
        $region14: #{conv_block_forward.1} parent=11 // pred_check_branch
          %136 = sbr.rel (%p134) target = $region16
        $region15: #{conv_block_forward.1} parent=11 // pred_region
          _
        $region16: #{conv_block_forward.1} parent=11 // pred_fallthru
          _
        // Predicated region
        $region17: #{conv_block_forward.1} parent=11 // pred_check
          %p137 = pneg %p91
        $region18: #{conv_block_forward.1} parent=11 // pred_check_branch
          %139 = sbr.rel (%p137) target = $region20
        $region19: #{conv_block_forward.1} parent=11 // pred_region
          _
        $region20: #{conv_block_forward.1} parent=11 // pred_fallthru
          _
      $region12: #{conv_block_forward.1} parent=5 // pred_fallthru
        _
      %p140 = scmp.lt.s32.totalorder %s9, 4
      // Predicated region
      $region21: #{conv_block_forward.1} parent=5 // pred_check
        %p141 = pneg %p140
      $region22: #{conv_block_forward.1} parent=5 // pred_check_branch
        %143 = sbr.rel (%p141) target = $region24
      $region23: #{conv_block_forward.1} parent=5 // pred_region
        // Predicated region
        $region25: #{conv_block_forward.1} parent=23 // pred_check
          %p144 = pneg %p43
        $region26: #{conv_block_forward.1} parent=23 // pred_check_branch
          %146 = sbr.rel (%p144) target = $region28
        $region27: #{conv_block_forward.1} parent=23 // pred_region
          %s147 = sand.u32 %s33, 1
          %s148 = sand.u32 %s33, 1
          %s149 = smul.addr %s148, 112
          %s150 = scalar_lea.vmem [#allocation2], %s149
          %s151 = smul.u32 2, %s17
          %s152 = smul.addr %s16, 56
          %s153 = sadd.s32 %s151, %s152
          %s154 = smul.addr %s153, 4
          %s155 = scalar_lea.vmem %s0, %s154
          // Predicated region
          $region29: #{conv_block_forward.1} parent=27 // pred_check
            _
          $region30: #{conv_block_forward.1} parent=27 // pred_check_branch
            %157 = sbr.rel (0) target = $region32
          $region31: #{conv_block_forward.1} parent=27 // pred_region
            // Predicated region
            $region33: #{conv_block_forward.1} parent=31 // pred_check
              _
            $region34: #{conv_block_forward.1} parent=31 // pred_check_branch
              %159 = sbr.rel (0) target = $region36
            $region35: #{conv_block_forward.1} parent=31 // pred_region
              // Predicated region
              $region48: #{conv_block_forward.1} parent=35 // pred_check
                _
              $region49: #{conv_block_forward.1} parent=35 // pred_check_branch
                %200 = sbr.rel (0) target = $region51
              $region50: #{conv_block_forward.1} parent=35 // pred_region
                loop: start=0, step=1, limit=1
                $region52: #{conv_block_forward.1} parent=50 // loop_pre_header
                  _
                $region53: #{conv_block_forward.1} parent=50 // loop_header
                  %s202 = sphi 0, %s206
                  %p203 = scmp.ge.s32.totalorder %s202, 1
                  %s207 = sphi %s155, %s155
                  %s208 = sphi %s150, %s150
                $region54: #{conv_block_forward.1} parent=50 // loop_header_branch
                  %205 = sbr.rel (%p203) target = $region58
                $region55: #{conv_block_forward.1} parent=50 // loop_body
                  %v209 = vld [vmem:[%s207] sm:$0xff]
                  %210 = vst [vmem:[%s208] sm:$0xff] %v209
                  %v211 = vld [vmem:[%s207 + $0x10] sm:$0xff]
                  %212 = vst [vmem:[%s208 + $0x8] sm:$0xff] %v211
                  %v213 = vld [vmem:[%s207 + $0x20] sm:$0xff]
                  %214 = vst [vmem:[%s208 + $0x10] sm:$0xff] %v213
                  %v215 = vld [vmem:[%s207 + $0x30] sm:$0xff]
                  %216 = vst [vmem:[%s208 + $0x18] sm:$0xff] %v215
                  %v217 = vld [vmem:[%s207 + $0x40] sm:$0xff]
                  %218 = vst [vmem:[%s208 + $0x20] sm:$0xff] %v217
                  %v219 = vld [vmem:[%s207 + $0x50] sm:$0xff]
                  %220 = vst [vmem:[%s208 + $0x28] sm:$0xff] %v219
                  %v221 = vld [vmem:[%s207 + $0x60] sm:$0xff]
                  %222 = vst [vmem:[%s208 + $0x30] sm:$0xff] %v221
                  %v223 = vld [vmem:[%s207 + $0x70] sm:$0xff]
                  %224 = vst [vmem:[%s208 + $0x38] sm:$0xff] %v223
                  %v225 = vld [vmem:[%s207 + $0x80] sm:$0xff]
                  %226 = vst [vmem:[%s208 + $0x40] sm:$0xff] %v225
                  %v227 = vld [vmem:[%s207 + $0x90] sm:$0xff]
                  %228 = vst [vmem:[%s208 + $0x48] sm:$0xff] %v227
                  %v229 = vld [vmem:[%s207 + $0xa0] sm:$0xff]
                  %230 = vst [vmem:[%s208 + $0x50] sm:$0xff] %v229
                  %v231 = vld [vmem:[%s207 + $0xb0] sm:$0xff]
                  %232 = vst [vmem:[%s208 + $0x58] sm:$0xff] %v231
                  %v233 = vld [vmem:[%s207 + $0xc0] sm:$0xff]
                  %234 = vst [vmem:[%s208 + $0x60] sm:$0xff] %v233
                  %v235 = vld [vmem:[%s207 + $0xd0] sm:$0xff]
                  %236 = vst [vmem:[%s208 + $0x68] sm:$0xff] %v235
                $region56: #{conv_block_forward.1} parent=50 // loop_footer
                  %s206 = sadd.s32 1, %s202
                $region57: #{conv_block_forward.1} parent=50 // loop_footer_branch
                  %201 = sbr.rel target = $region53
                $region58: #{conv_block_forward.1} parent=50 // loop_exit
                  _
              $region51: #{conv_block_forward.1} parent=35 // pred_fallthru
                _
              // Predicated region
              $region59: #{conv_block_forward.1} parent=35 // pred_check
                _
              $region60: #{conv_block_forward.1} parent=35 // pred_check_branch
                %238 = sbr.rel target = $region62
              $region61: #{conv_block_forward.1} parent=35 // pred_region
                _
              $region62: #{conv_block_forward.1} parent=35 // pred_fallthru
                _
            $region36: #{conv_block_forward.1} parent=31 // pred_fallthru
              _
            // Predicated region
            $region37: #{conv_block_forward.1} parent=31 // pred_check
              _
            $region38: #{conv_block_forward.1} parent=31 // pred_check_branch
              %161 = sbr.rel target = $region40
            $region39: #{conv_block_forward.1} parent=31 // pred_region
              loop: start=0, step=1, limit=1
              $region41: #{conv_block_forward.1} parent=39 // loop_pre_header
                _
              $region42: #{conv_block_forward.1} parent=39 // loop_header
                %s164 = sphi 0, %s168
                %p165 = scmp.ge.s32.totalorder %s164, 1
                %s169 = sphi %s155, %s155
                %s170 = sphi %s150, %s150
              $region43: #{conv_block_forward.1} parent=39 // loop_header_branch
                %167 = sbr.rel (%p165) target = $region47
              $region44: #{conv_block_forward.1} parent=39 // loop_body
                %v171 = vld [vmem:[%s169] sm:$0xff]
                %172 = vst [vmem:[%s170] sm:$0xff] %v171
                %v173 = vld [vmem:[%s169 + $0x10] sm:$0xff]
                %174 = vst [vmem:[%s170 + $0x8] sm:$0xff] %v173
                %v175 = vld [vmem:[%s169 + $0x20] sm:$0xff]
                %176 = vst [vmem:[%s170 + $0x10] sm:$0xff] %v175
                %v177 = vld [vmem:[%s169 + $0x30] sm:$0xff]
                %178 = vst [vmem:[%s170 + $0x18] sm:$0xff] %v177
                %v179 = vld [vmem:[%s169 + $0x40] sm:$0xff]
                %180 = vst [vmem:[%s170 + $0x20] sm:$0xff] %v179
                %v181 = vld [vmem:[%s169 + $0x50] sm:$0xff]
                %182 = vst [vmem:[%s170 + $0x28] sm:$0xff] %v181
                %v183 = vld [vmem:[%s169 + $0x60] sm:$0xff]
                %184 = vst [vmem:[%s170 + $0x30] sm:$0xff] %v183
                %v185 = vld [vmem:[%s169 + $0x70] sm:$0xff]
                %186 = vst [vmem:[%s170 + $0x38] sm:$0xff] %v185
                %v187 = vld [vmem:[%s169 + $0x80] sm:$0xff]
                %188 = vst [vmem:[%s170 + $0x40] sm:$0xff] %v187
                %v189 = vld [vmem:[%s169 + $0x90] sm:$0xff]
                %190 = vst [vmem:[%s170 + $0x48] sm:$0xff] %v189
                %v191 = vld [vmem:[%s169 + $0xa0] sm:$0xff]
                %192 = vst [vmem:[%s170 + $0x50] sm:$0xff] %v191
                %v193 = vld [vmem:[%s169 + $0xb0] sm:$0xff]
                %194 = vst [vmem:[%s170 + $0x58] sm:$0xff] %v193
                %v195 = vld [vmem:[%s169 + $0xc0] sm:$0xff]
                %196 = vst [vmem:[%s170 + $0x60] sm:$0xff] %v195
                %v197 = vld [vmem:[%s169 + $0xd0] sm:$0xff]
                %198 = vst [vmem:[%s170 + $0x68] sm:$0xff] %v197
              $region45: #{conv_block_forward.1} parent=39 // loop_footer
                %s168 = sadd.s32 1, %s164
              $region46: #{conv_block_forward.1} parent=39 // loop_footer_branch
                %163 = sbr.rel target = $region42
              $region47: #{conv_block_forward.1} parent=39 // loop_exit
                _
            $region40: #{conv_block_forward.1} parent=31 // pred_fallthru
              _
          $region32: #{conv_block_forward.1} parent=27 // pred_fallthru
            _
          %239 = vnop
        $region28: #{conv_block_forward.1} parent=23 // pred_fallthru
          _
      $region24: #{conv_block_forward.1} parent=5 // pred_fallthru
        _
      %p240 = scmp.le.s32.totalorder 1, %s9
      %p241 = scmp.lt.s32.totalorder %s9, 5
      %p242 = pnand %p240, %p241
      %p243 = pneg %p242
      // Predicated region
      $region63: #{conv_block_forward.1} parent=5 // pred_check
        _
      $region64: #{conv_block_forward.1} parent=5 // pred_check_branch
        %245 = sbr.rel (%p242) target = $region66
      $region65: #{conv_block_forward.1} parent=5 // pred_region
        %s246 = ssub.s32 %s9, 1
        %s247 = sand.u32 %s36, 1
        %s248 = sand.u32 %s36, 1
        %s249 = smul.addr %s248, 112
        %s250 = scalar_lea.vmem [#allocation2], %s249
        // Predicated region
        $region67: #{conv_block_forward.1} parent=65 // pred_check
          %p251 = pneg %p49
        $region68: #{conv_block_forward.1} parent=65 // pred_check_branch
          %253 = sbr.rel (%p251) target = $region70
        $region69: #{conv_block_forward.1} parent=65 // pred_region
          _
        $region70: #{conv_block_forward.1} parent=65 // pred_fallthru
          _
        %s254 = sand.u32 %s36, 1
        %s255 = sand.u32 %s36, 1
        %s256 = smul.addr %s255, 112
        %s257 = scalar_lea.vmem [#allocation2], %s256
        %p258 = pneg %p49
        %p259 = pneg %p46
        %p260 = pneg %p70
        %p261 = pneg %p67
        %p262 = pneg %p91
        %p263 = pneg %p88
        %p264 = pneg %p119
        %p265 = pneg %p116
        %s266 = smul.u32 2, %s19
        %p267 = scmp.lt.s32.totalorder %s18, 1
        %s268 = scalar_select %p267, %s18, 1
        %p269 = scmp.lt.s32.totalorder %s266, 3
        %s270 = scalar_select %p269, %s266, 3
        %s271 = smul.addr %s268, 4
        %s272 = sadd.s32 %s270, %s271
        %s273 = smul.addr %s272, 8
        %s274 = scalar_lea.vmem %s3, %s273
        %s275 = smul.u32 2, %s19
        %s276 = smul.u32 2, %s19
        %p277 = scmp.lt.s32.totalorder %s18, 1
        %s278 = scalar_select %p277, %s18, 1
        %p279 = scmp.lt.s32.totalorder %s276, 3
        %s280 = scalar_select %p279, %s276, 3
        %s281 = smul.addr %s278, 4
        %s282 = sadd.s32 %s280, %s281
        %s283 = smul.addr %s282, 8
        %s284 = scalar_lea.vmem %s3, %s283
        %s285 = smul.u32 2, %s19
        %v287 = vld [vmem:[%s1] sm:$0xf]
        %v288 = vld [vmem:[%s250] sm:$0xff]
        %v289 = vld [vmem:[%s250 + $0x8] sm:$0xff]
        %v290 = vld [vmem:[%s250 + $0x10] sm:$0xff]
        %v291 = vld [vmem:[%s250 + $0x18] sm:$0xff]
        %v292 = vld [vmem:[%s250 + $0x20] sm:$0xff]
        %v293 = vld [vmem:[%s250 + $0x28] sm:$0xff]
        %v294 = vld [vmem:[%s250 + $0x30] sm:$0xff]
        %v295 = vld [vmem:[%s250 + $0x38] sm:$0xff]
        %v296 = vld [vmem:[%s250 + $0x40] sm:$0xff]
        %v297 = vld [vmem:[%s250 + $0x48] sm:$0xff]
        %v298 = vld [vmem:[%s250 + $0x50] sm:$0xff]
        %v299 = vld [vmem:[%s250 + $0x58] sm:$0xff]
        %v300 = vld [vmem:[%s250 + $0x60] sm:$0xff]
        %v301 = vld [vmem:[%s250 + $0x68] sm:$0xff]
        %v302 = vld [vmem:[%s2] sm:$0xff]
        %304 = vset.pattern.permute.xlu0 0
        %305 = vperm.xlu0 %304, %v302
        %v306 = vpop.permute.xlu0 %305
        %v322 = vunpack.c.l.b16 %v288
        %v323 = vunpack.c.h.b16 %v288
        %v324 = vunpack.c.l.b16 %v289
        %v325 = vunpack.c.h.b16 %v289
        %v326 = vunpack.c.l.b16 %v290
        %v327 = vunpack.c.h.b16 %v290
        %v328 = vunpack.c.l.b16 %v291
        %v329 = vunpack.c.h.b16 %v291
        %v330 = vunpack.c.l.b16 %v292
        %v331 = vunpack.c.h.b16 %v292
        %v332 = vunpack.c.l.b16 %v293
        %v333 = vunpack.c.h.b16 %v293
        %v334 = vunpack.c.l.b16 %v294
        %v335 = vunpack.c.h.b16 %v294
        %v336 = vunpack.c.l.b16 %v295
        %v337 = vunpack.c.h.b16 %v295
        %v338 = vunpack.c.l.b16 %v296
        %v339 = vunpack.c.h.b16 %v296
        %v340 = vunpack.c.l.b16 %v297
        %v341 = vunpack.c.h.b16 %v297
        %v342 = vunpack.c.l.b16 %v298
        %v343 = vunpack.c.h.b16 %v298
        %v344 = vunpack.c.l.b16 %v299
        %v345 = vunpack.c.h.b16 %v299
        %v346 = vunpack.c.l.b16 %v300
        %v347 = vunpack.c.h.b16 %v300
        %v348 = vunpack.c.l.b16 %v301
        %v349 = vunpack.c.h.b16 %v301
        %v350 = vpack.c.b16 %v324, %v322
        %v351 = vpack.c.b16 %v325, %v323
        %v352 = vpack.c.b16 %v328, %v326
        %v353 = vpack.c.b16 %v329, %v327
        %v354 = vpack.c.b16 %v332, %v330
        %v355 = vpack.c.b16 %v333, %v331
        %v356 = vpack.c.b16 %v336, %v334
        %v357 = vpack.c.b16 %v337, %v335
        %v358 = vpack.c.b16 %v340, %v338
        %v359 = vpack.c.b16 %v341, %v339
        %v360 = vpack.c.b16 %v344, %v342
        %v361 = vpack.c.b16 %v345, %v343
        %v362 = vpack.c.b16 %v348, %v346
        %v363 = vpack.c.b16 %v349, %v347
        %vm378 = vcmask 916480
        %v380 = vsel %vm378, %v287, 0
        %382 = vmatprep.subr.bf16.mxu0 %v351
        %383 = vmatpush1.bf16.msra.mxu0 %v350
        %384 = vmatprep.subr.bf16.mxu0 %v353
        %385 = vmatpush1.bf16.msra.mxu0 %v352
        %386 = vmatprep.subr.bf16.mxu0 %v355
        %387 = vmatpush1.bf16.msra.mxu0 %v354
        %388 = vmatprep.subr.bf16.mxu0 %v357
        %389 = vmatpush1.bf16.msra.mxu0 %v356
        %390 = vmatprep.subr.bf16.mxu0 %v359
        %391 = vmatpush1.bf16.msra.mxu0 %v358
        %392 = vmatprep.subr.bf16.mxu0 %v361
        %393 = vmatpush1.bf16.msra.mxu0 %v360
        %394 = vmatprep.subr.bf16.mxu0 %v363
        %395 = vmatpush1.bf16.msra.mxu0 %v362
        %396 = vmatprep.subr.bf16.mxu0 0
        %397 = vmatpush1.bf16.msra.mxu0 0
        %398 = vmatprep.subr.bf16.mxu0 0
        %399 = vmatpush1.bf16.msra.mxu0 0
        %400 = vmatprep.subr.bf16.mxu0 0
        %401 = vmatpush1.bf16.msra.mxu0 0
        %402 = vmatprep.subr.bf16.mxu0 0
        %403 = vmatpush1.bf16.msra.mxu0 0
        %404 = vmatprep.subr.bf16.mxu0 0
        %405 = vmatpush1.bf16.msra.mxu0 0
        %406 = vmatprep.subr.bf16.mxu0 0
        %407 = vmatpush1.bf16.msra.mxu0 0
        %408 = vmatprep.subr.bf16.mxu0 0
        %409 = vmatpush1.bf16.msra.mxu0 0
        %410 = vmatprep.subr.bf16.mxu0 0
        %411 = vmatpush1.bf16.msra.mxu0 0
        %412 = vmatprep.subr.bf16.mxu0 0
        %413 = vmatpush1.bf16.msra.mxu0 0
        %414 = vmatprep.mubr.bf16.mxu0 0
        %415 = vmatmul.mubr.bf16.gmra.mrb[0].mxu0 %v380
        %v416 = vpop.f32.mrb[0].mxu0
        %v417 = vadd.f32 %v306, %v416
        %v418 = vpop.f32.mrb[0].mxu0
        %v419 = vadd.f32 %v306, %v418
        %v420 = vpop.f32.mrb[0].mxu0
        %v421 = vpop.f32.mrb[0].mxu0
        %422 = vdwg.mxu0
        %v423 = vmax.f32 %v417, 0.0
        %v424 = vmax.f32 %v419, 0.0
        %425 = vst [vmem:[%s284] sm:$0xff] %v423
        %426 = vst [vmem:[%s284 + $0x8] sm:$0xff] %v424
        %s427 = smul.u32 2, %s19
        %p428 = scmp.lt.s32.totalorder %s18, 1
        %s429 = scalar_select %p428, %s18, 1
        %p430 = scmp.lt.s32.totalorder %s427, 3
        %s431 = scalar_select %p430, %s427, 3
        %s432 = smul.addr %s429, 4
        %s433 = sadd.s32 %s431, %s432
        %s434 = smul.addr %s433, 8
        %s435 = scalar_lea.vmem %s3, %s434
        // Predicated region
        $region71: #{conv_block_forward.1} parent=65 // pred_check
          %p436 = pneg %p116
        $region72: #{conv_block_forward.1} parent=65 // pred_check_branch
          %438 = sbr.rel (%p436) target = $region74
        $region73: #{conv_block_forward.1} parent=65 // pred_region
          %s439 = smul.u32 2, %s19
        $region74: #{conv_block_forward.1} parent=65 // pred_fallthru
          _
      $region66: #{conv_block_forward.1} parent=5 // pred_fallthru
        _
      %p440 = scmp.le.s32.totalorder 2, %s9
      // Predicated region
      $region75: #{conv_block_forward.1} parent=5 // pred_check
        %p441 = pneg %p440
      $region76: #{conv_block_forward.1} parent=5 // pred_check_branch
        %443 = sbr.rel (%p441) target = $region78
      $region77: #{conv_block_forward.1} parent=5 // pred_region
        %s444 = ssub.s32 %s9, 2
        // Predicated region
        $region79: #{conv_block_forward.1} parent=77 // pred_check
          %p445 = pneg %p122
        $region80: #{conv_block_forward.1} parent=77 // pred_check_branch
          %447 = sbr.rel (%p445) target = $region82
        $region81: #{conv_block_forward.1} parent=77 // pred_region
          %s448 = smul.u32 2, %s21
          %p449 = scmp.lt.s32.totalorder %s20, 1
          %s450 = scalar_select %p449, %s20, 1
          %p451 = scmp.lt.s32.totalorder %s448, 3
          %s452 = scalar_select %p451, %s448, 3
          %s453 = smul.addr %s450, 4
          %s454 = sadd.s32 %s452, %s453
          %s455 = smul.addr %s454, 8
          %s456 = scalar_lea.vmem %s3, %s455
        $region82: #{conv_block_forward.1} parent=77 // pred_fallthru
          _
      $region78: #{conv_block_forward.1} parent=5 // pred_fallthru
        _
    $region6: #{conv_block_forward.1} parent=1 // loop_footer
      %s13 = sadd.s32 1, %s9
    $region7: #{conv_block_forward.1} parent=1 // loop_footer_branch
      %8 = sbr.rel target = $region3
    $region8: #{conv_block_forward.1} parent=1 // loop_exit
      _

</llo_original>
